<compile_context>
chip_gen: v5e
topology: v5e:2x2
jax: 0.10.0
libtpu: 0.0.40
codegen_flags: <defaults>
</compile_context>

<pallas_src>
import math
from functools import partial

import jax
import jax.numpy as jnp
from jax import lax
from jax.experimental import pallas as pl
from jax.experimental.pallas import tpu as pltpu

HIDDEN = 64


def qnetwork_kernel(x_ref, w1_ref, w2_ref, w3_ref, bias_ref, outT_ref):
    """MLP block: x [TB, S] (natural layout) -> outT [A_pad, TB] (lane-dense batch).

    w1: [H, S], w2: [H, H], w3: [A_pad, H]   (PyTorch [out, in] layout)
    bias: [H, 3] f32; column j = bias of layer j (b3 occupies the first A rows of col 2,
    padded rows are zero so padded output rows come out exactly 0).
    """
    compute_dtype = w1_ref.dtype
    a_pad = outT_ref.shape[0]

    b1 = bias_ref[:, 0:1]            # [H, 1] f32
    b2 = bias_ref[:, 1:2]            # [H, 1] f32
    b3 = bias_ref[0:a_pad, 2:3]      # [A_pad, 1] f32

    x = x_ref[...]                   # [TB, S] in compute dtype (bf16 by default)

    # fc1 + relu: contract over S on both operands -> [H, TB]; the feed transpose of the
    # tiny [TB, 8] tile happens in-kernel. MXU accumulates f32; epilogue is f32 (v5e-safe).
    h1 = lax.dot_general(w1_ref[...], x, (((1,), (1,)), ((), ())),
                         preferred_element_type=jnp.float32)
    h1 = jnp.maximum(h1 + b1, 0.0).astype(compute_dtype)   # single cast; bf16 intermediate

    # fc2 + relu
    h2 = jnp.dot(w2_ref[...], h1, preferred_element_type=jnp.float32)
    h2 = jnp.maximum(h2 + b2, 0.0).astype(compute_dtype)

    # fc3 (no activation); [A_pad, TB] -> full-vreg unmasked store
    out = jnp.dot(w3_ref[...], h2, preferred_element_type=jnp.float32)
    outT_ref[...] = (out + b3).astype(outT_ref.dtype)


def _round_up(n, m):
    return ((n + m - 1) // m) * m


def prepare_qnetwork_params(params, compute_dtype=jnp.bfloat16):
    """One-time parameter prep (hoisted out of the forward path).

    params: dict fc1/fc2/fc3 -> (w [out, in], b [out]) like torch.nn.Linear.
    Returns (w1c, w2c, w3_padded, bias_packed, action_size).
    """
    w1, b1 = params["fc1"]
    w2, b2 = params["fc2"]
    w3, b3 = params["fc3"]
    H = w1.shape[0]
    A = w3.shape[0]
    A_pad = _round_up(A, 8)

    w1c = w1.astype(compute_dtype)
    w2c = w2.astype(compute_dtype)
    w3p = jnp.zeros((A_pad, H), compute_dtype).at[:A, :].set(w3.astype(compute_dtype))

    bias = jnp.zeros((H, 3), jnp.float32)
    bias = bias.at[:, 0].set(b1.astype(jnp.float32))
    bias = bias.at[:, 1].set(b2.astype(jnp.float32))
    bias = bias.at[:A, 2].set(b3.astype(jnp.float32))
    return w1c, w2c, w3p, bias, A


@partial(jax.jit, static_argnames=("action_size", "block_batch"))
def qnetwork_forward(x, w1c, w2c, w3p, bias, *, action_size, block_batch=1024):
    """x: [B, state_size] -> [B, action_size] float32 (matches PyTorch QNetwork.forward)."""
    B, S = x.shape
    H = w1c.shape[0]
    A_pad = w3p.shape[0]
    compute_dtype = w1c.dtype

    # Lane-dense batch tile (multiple of 128). Guarantee >= 2 grid steps whenever the
    # 128-rounded batch allows it, so v7x's two TensorCores both get work.
    B128 = _round_up(B, 128)
    TB = min(int(block_batch), B128)
    if B128 >= 256:
        TB = min(TB, B128 // 2)
    TB = max(128, (TB // 128) * 128)
    padded_B = _round_up(B, TB)
    num_blocks = padded_B // TB

    # Natural [B, S] layout (no wrapper transpose); cast + pad fuse under jit.
    x_c = x.astype(compute_dtype)
    if padded_B != B:
        x_c = jnp.pad(x_c, ((0, padded_B - B), (0, 0)))

    dsize = jnp.dtype(compute_dtype).itemsize
    flops = 2 * padded_B * (S * H + H * H + A_pad * H)
    bytes_accessed = (
        padded_B * S * dsize                     # streamed input
        + padded_B * A_pad * 4                   # streamed output (f32)
        + (H * S + H * H + A_pad * H) * dsize    # resident weights
        + H * 3 * 4                              # packed biases (f32)
    )

    outT = pl.pallas_call(
        qnetwork_kernel,
        out_shape=jax.ShapeDtypeStruct((A_pad, padded_B), jnp.float32),
        grid=(num_blocks,),
        in_specs=[
            pl.BlockSpec((TB, S), lambda i: (i, 0)),     # activations: tiled over batch
            pl.BlockSpec(w1c.shape, lambda i: (0, 0)),   # weights stay VMEM-resident
            pl.BlockSpec(w2c.shape, lambda i: (0, 0)),
            pl.BlockSpec(w3p.shape, lambda i: (0, 0)),
            pl.BlockSpec(bias.shape, lambda i: (0, 0)),
        ],
        out_specs=pl.BlockSpec((A_pad, TB), lambda i: (0, i)),
        compiler_params=pltpu.CompilerParams(
            dimension_semantics=("parallel",),           # v7x megacore shards the batch
        ),
        cost_estimate=pl.CostEstimate(
            flops=flops, transcendentals=0, bytes_accessed=bytes_accessed),
    )(x_c, w1c, w2c, w3p, bias)

    return jnp.transpose(outT[:action_size, :B])


def init_qnetwork_params(key, state_size, action_size, hidden=HIDDEN):
    """PyTorch nn.Linear default init (uniform +/- 1/sqrt(fan_in)); w stored [out, in]."""
    def linear(key, fan_in, fan_out):
        kw, kb = jax.random.split(key)
        bound = 1.0 / math.sqrt(fan_in)
        w = jax.random.uniform(kw, (fan_out, fan_in), jnp.float32, -bound, bound)
        b = jax.random.uniform(kb, (fan_out,), jnp.float32, -bound, bound)
        return w, b

    k1, k2, k3 = jax.random.split(key, 3)
    return {
        "fc1": linear(k1, state_size, hidden),
        "fc2": linear(k2, hidden, hidden),
        "fc3": linear(k3, hidden, action_size),
    }


def qnetwork_reference(x, params):
    """Pure-JAX reference (torch semantics: y = x W^T + b)."""
    w1, b1 = params["fc1"]
    w2, b2 = params["fc2"]
    w3, b3 = params["fc3"]
    h = jnp.maximum(x @ w1.T + b1, 0.0)
    h = jnp.maximum(h @ w2.T + b2, 0.0)
    return h @ w3.T + b3


if __name__ == "__main__":
    state_size = 8
    action_size = 4
    batch = 256

    key = jax.random.PRNGKey(0)
    k_params, k_x, k_x2 = jax.random.split(key, 3)
    params = init_qnetwork_params(k_params, state_size, action_size)
    x = jax.random.normal(k_x, (batch, state_size), jnp.float32)
    ref = qnetwork_reference(x, params)

    # Default path: bf16 MXU operands (all generations), f32 accumulate + f32 epilogue.
    w1c, w2c, w3p, bias, A = prepare_qnetwork_params(params)          # one-time prep
    out = jax.block_until_ready(
        qnetwork_forward(x, w1c, w2c, w3p, bias, action_size=A))
    assert out.shape == (batch, action_size)
    assert jnp.allclose(out, ref, atol=5e-2, rtol=5e-2), "bf16 mismatch vs reference"

    # Ragged batch (exercises wrapper-side padding and the >=2-grid-step tiling).
    x2 = jax.random.normal(k_x2, (200, state_size), jnp.float32)
    ref2 = qnetwork_reference(x2, params)
    out2 = jax.block_until_ready(
        qnetwork_forward(x2, w1c, w2c, w3p, bias, action_size=A))
    assert out2.shape == (200, action_size)
    assert jnp.allclose(out2, ref2, atol=5e-2, rtol=5e-2), "ragged-batch mismatch"

    # f32 operand path (tight-tolerance correctness check of the kernel structure).
    w1f, w2f, w3f, biasf, _ = prepare_qnetwork_params(params, compute_dtype=jnp.float32)
    out_f32 = jax.block_until_ready(
        qnetwork_forward(x, w1f, w2f, w3f, biasf, action_size=A, block_batch=128))
    assert jnp.allclose(out_f32, ref, atol=1e-5, rtol=1e-5), "f32 mismatch vs reference"

    print("KERNEL_OK")
</pallas_src>

<mosaic_0001>
module attributes {stable_mosaic.version = 11 : i64} {
  func.func @qnetwork_kernel(%arg0: i32, %arg1: memref<128x8xbf16, #tpu.memory_space<vmem>>, %arg2: memref<64x8xbf16, #tpu.memory_space<vmem>>, %arg3: memref<64x64xbf16, #tpu.memory_space<vmem>>, %arg4: memref<8x64xbf16, #tpu.memory_space<vmem>>, %arg5: memref<64x3xf32, #tpu.memory_space<vmem>>, %arg6: memref<8x128xf32, #tpu.memory_space<vmem>>) attributes {dimension_semantics = [#tpu.dimension_semantics<parallel>], iteration_bounds = array<i64: 2>, scalar_prefetch = 0 : i64, scratch_operands = 0 : i64, tpu.core_type = #tpu.core_type<tc>, window_params = [{transform_indices = @transform_0, window_bounds = array<i64: 128, 8>}, {pipeline_mode = #tpu.pipeline_mode<synchronous>, transform_indices = @transform_1, window_bounds = array<i64: 64, 8>}, {pipeline_mode = #tpu.pipeline_mode<synchronous>, transform_indices = @transform_2, window_bounds = array<i64: 64, 64>}, {pipeline_mode = #tpu.pipeline_mode<synchronous>, transform_indices = @transform_3, window_bounds = array<i64: 8, 64>}, {pipeline_mode = #tpu.pipeline_mode<synchronous>, transform_indices = @transform_4, window_bounds = array<i64: 64, 3>}, {transform_indices = @transform_5, window_bounds = array<i64: 8, 128>}]} {
    %c0 = arith.constant 0 : index
    %c0_0 = arith.constant 0 : index
    %0 = vector.load %arg5[%c0, %c0_0] : memref<64x3xf32, #tpu.memory_space<vmem>>, vector<64x1xf32>
    %c0_1 = arith.constant 0 : index
    %c1 = arith.constant 1 : index
    %1 = vector.load %arg5[%c0_1, %c1] : memref<64x3xf32, #tpu.memory_space<vmem>>, vector<64x1xf32>
    %c0_2 = arith.constant 0 : index
    %c2 = arith.constant 2 : index
    %2 = vector.load %arg5[%c0_2, %c2] : memref<64x3xf32, #tpu.memory_space<vmem>>, vector<8x1xf32>
    %c0_3 = arith.constant 0 : index
    %c0_4 = arith.constant 0 : index
    %3 = vector.load %arg1[%c0_3, %c0_4] : memref<128x8xbf16, #tpu.memory_space<vmem>>, vector<128x8xbf16>
    %c0_5 = arith.constant 0 : index
    %c0_6 = arith.constant 0 : index
    %4 = vector.load %arg2[%c0_5, %c0_6] : memref<64x8xbf16, #tpu.memory_space<vmem>>, vector<64x8xbf16>
    %cst = arith.constant dense<0.000000e+00> : vector<64x128xf32>
    %5 = tpu.matmul %4, %3, %cst {dimension_numbers = #tpu.dot_dimension_numbers<[1], [1], [0], [0], [0, 0, 1, 0], [], []>} : vector<64x8xbf16>, vector<128x8xbf16>, vector<64x128xf32> -> vector<64x128xf32>
    %6 = vector.broadcast %0 : vector<64x1xf32> to vector<64x128xf32>
    %7 = arith.addf %5, %6 : vector<64x128xf32>
    %cst_7 = arith.constant 0.000000e+00 : f32
    %8 = vector.broadcast %cst_7 : f32 to vector<64x128xf32>
    %9 = arith.maximumf %7, %8 : vector<64x128xf32>
    %10 = arith.truncf %9 : vector<64x128xf32> to vector<64x128xbf16>
    %c0_8 = arith.constant 0 : index
    %c0_9 = arith.constant 0 : index
    %11 = vector.load %arg3[%c0_8, %c0_9] : memref<64x64xbf16, #tpu.memory_space<vmem>>, vector<64x64xbf16>
    %cst_10 = arith.constant dense<0.000000e+00> : vector<64x128xf32>
    %12 = tpu.matmul %11, %10, %cst_10 {dimension_numbers = #tpu.dot_dimension_numbers<[1], [0], [0], [1], [0, 0, 1, 1], [], []>} : vector<64x64xbf16>, vector<64x128xbf16>, vector<64x128xf32> -> vector<64x128xf32>
    %13 = vector.broadcast %1 : vector<64x1xf32> to vector<64x128xf32>
    %14 = arith.addf %12, %13 : vector<64x128xf32>
    %cst_11 = arith.constant 0.000000e+00 : f32
    %15 = vector.broadcast %cst_11 : f32 to vector<64x128xf32>
    %16 = arith.maximumf %14, %15 : vector<64x128xf32>
    %17 = arith.truncf %16 : vector<64x128xf32> to vector<64x128xbf16>
    %c0_12 = arith.constant 0 : index
    %c0_13 = arith.constant 0 : index
    %18 = vector.load %arg4[%c0_12, %c0_13] : memref<8x64xbf16, #tpu.memory_space<vmem>>, vector<8x64xbf16>
    %cst_14 = arith.constant dense<0.000000e+00> : vector<8x128xf32>
    %19 = tpu.matmul %18, %17, %cst_14 {dimension_numbers = #tpu.dot_dimension_numbers<[1], [0], [0], [1], [0, 0, 1, 1], [], []>} : vector<8x64xbf16>, vector<64x128xbf16>, vector<8x128xf32> -> vector<8x128xf32>
    %20 = vector.broadcast %2 : vector<8x1xf32> to vector<8x128xf32>
    %21 = arith.addf %19, %20 : vector<8x128xf32>
    %c0_15 = arith.constant 0 : index
    %c0_16 = arith.constant 0 : index
    %22 = vector.load %arg6[%c0_15, %c0_16] : memref<8x128xf32, #tpu.memory_space<vmem>>, vector<8x128xf32>
    tpu.vector_store %arg6[%c0_15, %c0_16], %21 {strides = array<i32>} : memref<8x128xf32, #tpu.memory_space<vmem>>, vector<8x128xf32>,
    return
  }
  func.func @transform_0(%arg0: i32) -> (i32, i32) {
    %c0_i32 = arith.constant 0 : i32
    %c0_i32_0 = arith.constant 0 : i32
    return %arg0, %c0_i32 : i32, i32
  }
  func.func @transform_1(%arg0: i32) -> (i32, i32) {
    %c0_i32 = arith.constant 0 : i32
    %c0_i32_0 = arith.constant 0 : i32
    %c0_i32_1 = arith.constant 0 : i32
    return %c0_i32, %c0_i32_0 : i32, i32
  }
  func.func @transform_2(%arg0: i32) -> (i32, i32) {
    %c0_i32 = arith.constant 0 : i32
    %c0_i32_0 = arith.constant 0 : i32
    %c0_i32_1 = arith.constant 0 : i32
    return %c0_i32, %c0_i32_0 : i32, i32
  }
  func.func @transform_3(%arg0: i32) -> (i32, i32) {
    %c0_i32 = arith.constant 0 : i32
    %c0_i32_0 = arith.constant 0 : i32
    %c0_i32_1 = arith.constant 0 : i32
    return %c0_i32, %c0_i32_0 : i32, i32
  }
  func.func @transform_4(%arg0: i32) -> (i32, i32) {
    %c0_i32 = arith.constant 0 : i32
    %c0_i32_0 = arith.constant 0 : i32
    %c0_i32_1 = arith.constant 0 : i32
    return %c0_i32, %c0_i32_0 : i32, i32
  }
  func.func @transform_5(%arg0: i32) -> (i32, i32) {
    %c0_i32 = arith.constant 0 : i32
    %c0_i32_0 = arith.constant 0 : i32
    return %c0_i32, %arg0 : i32, i32
  }
}

</mosaic_0001>

<llo_original>
// kernel: qnetwork_forward.1
$region0: #{qnetwork_forward.1}
  #allocation0 [shape = 'u32[]', space=smem, size = 0x4, offset = 0x4, fixed_abs, tag = 'smem constant byte address 0x4 - core index']
  #allocation1 [shape = 'u32[72,128]{1,0:T(1,128)}', space=vmem, size = 0x9000, scoped, tag = 'internal scratch']
  %s0 = inlined_call_operand.vmem [shape: bf16[256,8], index: 0, kind: input, shape index: {}]
  %s1 = inlined_call_operand.vmem [shape: bf16[64,8], index: 1, kind: input, shape index: {}]
  %s2 = inlined_call_operand.vmem [shape: bf16[64,64], index: 2, kind: input, shape index: {}]
  %s3 = inlined_call_operand.vmem [shape: bf16[8,64], index: 3, kind: input, shape index: {}]
  %s4 = inlined_call_operand.vmem [shape: f32[64,3], index: 4, kind: input, shape index: {}]
  %s5 = inlined_call_operand.vmem [shape: f32[8,256], index: 5, kind: output, shape index: {}]
  %s6 = sld [smem:[#allocation0]]
  $region53: #{qnetwork_forward.1} parent=0
    _
  %s8 = ssub.s32 1, %s6
  %s9 = scalar_select 0, %s8, %s6
  loop: start=0, step=1, limit=4
  $region2: #{qnetwork_forward.1} parent=0 // loop_pre_header
    _
  $region3: #{qnetwork_forward.1} parent=0 // loop_header
    %s11 = sphi 0, %s15
    %p12 = scmp.ge.s32.totalorder %s11, 4
    %s21 = sphi 0, %s23
    %s24 = sphi 0, %s21
    %s25 = sphi 0, %s24
    %s41 = sphi 0, %s25
    %s45 = sphi 0, %s45
    %s47 = sphi 0, %s45
    %s48 = sphi 0, %s47
    %s62 = sphi 0, %s48
    %s66 = sphi 0, %s66
    %s68 = sphi 0, %s66
    %s69 = sphi 0, %s68
    %s83 = sphi 0, %s69
    %s87 = sphi 0, %s87
    %s89 = sphi 0, %s87
    %s90 = sphi 0, %s89
    %s104 = sphi 0, %s90
    %s108 = sphi 0, %s108
    %s110 = sphi 0, %s108
    %s111 = sphi 0, %s110
    %s125 = sphi 0, %s111
    %s131 = sphi 0, %s133
    %s134 = sphi 0, %s131
    %s135 = sphi 0, %s134
    %s151 = sphi 0, %s135
  $region4: #{qnetwork_forward.1} parent=0 // loop_header_branch
    %14 = sbr.rel (%p12) target = $region8
  $region5: #{qnetwork_forward.1} parent=0 // loop_body
    %s16 = ssub.s32 %s11, 1
    %s17 = ssub.s32 %s11, 2
    %s18 = sadd.s32 %s11, 1
    %s19 = ssub.s32 %s11, %s18
    %p20 = scmp.eq.s32.totalorder %s19, 0
    %s22 = sadd.s32 %s21, 1
    %s23 = scalar_select %p20, %s21, %s22
    %p26 = pneg %p20
    %p27 = scmp.eq.s32.totalorder %s11, 1
    %p28 = por %p26, %p27
    %p29 = scmp.ne.s32.totalorder %s21, %s24
    %p30 = scmp.eq.s32.totalorder %s11, 0
    %p31 = por %p29, %p30
    %p32 = scmp.ne.s32.totalorder %s21, %s24
    %p33 = scmp.eq.s32.totalorder %s16, 1
    %p34 = por %p32, %p33
    %p35 = scmp.ne.s32.totalorder %s24, %s25
    %p36 = scmp.eq.s32.totalorder %s16, 0
    %p37 = por %p35, %p36
    %p38 = scmp.ne.s32.totalorder %s24, %s25
    %p39 = scmp.eq.s32.totalorder %s17, 1
    %p40 = por %p38, %p39
    %p42 = scmp.ne.s32.totalorder %s25, %s41
    %p43 = scmp.eq.s32.totalorder %s17, 0
    %p44 = por %p42, %p43
    %s46 = sadd.s32 %s45, 1
    %p49 = scmp.eq.s32.totalorder %s11, 1
    %p50 = scmp.ne.s32.totalorder %s45, %s47
    %p51 = scmp.eq.s32.totalorder %s11, 0
    %p52 = por %p50, %p51
    %p53 = scmp.ne.s32.totalorder %s45, %s47
    %p54 = scmp.eq.s32.totalorder %s16, 1
    %p55 = por %p53, %p54
    %p56 = scmp.ne.s32.totalorder %s47, %s48
    %p57 = scmp.eq.s32.totalorder %s16, 0
    %p58 = por %p56, %p57
    %p59 = scmp.ne.s32.totalorder %s47, %s48
    %p60 = scmp.eq.s32.totalorder %s17, 1
    %p61 = por %p59, %p60
    %p63 = scmp.ne.s32.totalorder %s48, %s62
    %p64 = scmp.eq.s32.totalorder %s17, 0
    %p65 = por %p63, %p64
    %s67 = sadd.s32 %s66, 1
    %p70 = scmp.eq.s32.totalorder %s11, 1
    %p71 = scmp.ne.s32.totalorder %s66, %s68
    %p72 = scmp.eq.s32.totalorder %s11, 0
    %p73 = por %p71, %p72
    %p74 = scmp.ne.s32.totalorder %s66, %s68
    %p75 = scmp.eq.s32.totalorder %s16, 1
    %p76 = por %p74, %p75
    %p77 = scmp.ne.s32.totalorder %s68, %s69
    %p78 = scmp.eq.s32.totalorder %s16, 0
    %p79 = por %p77, %p78
    %p80 = scmp.ne.s32.totalorder %s68, %s69
    %p81 = scmp.eq.s32.totalorder %s17, 1
    %p82 = por %p80, %p81
    %p84 = scmp.ne.s32.totalorder %s69, %s83
    %p85 = scmp.eq.s32.totalorder %s17, 0
    %p86 = por %p84, %p85
    %s88 = sadd.s32 %s87, 1
    %p91 = scmp.eq.s32.totalorder %s11, 1
    %p92 = scmp.ne.s32.totalorder %s87, %s89
    %p93 = scmp.eq.s32.totalorder %s11, 0
    %p94 = por %p92, %p93
    %p95 = scmp.ne.s32.totalorder %s87, %s89
    %p96 = scmp.eq.s32.totalorder %s16, 1
    %p97 = por %p95, %p96
    %p98 = scmp.ne.s32.totalorder %s89, %s90
    %p99 = scmp.eq.s32.totalorder %s16, 0
    %p100 = por %p98, %p99
    %p101 = scmp.ne.s32.totalorder %s89, %s90
    %p102 = scmp.eq.s32.totalorder %s17, 1
    %p103 = por %p101, %p102
    %p105 = scmp.ne.s32.totalorder %s90, %s104
    %p106 = scmp.eq.s32.totalorder %s17, 0
    %p107 = por %p105, %p106
    %s109 = sadd.s32 %s108, 1
    %p112 = scmp.eq.s32.totalorder %s11, 1
    %p113 = scmp.ne.s32.totalorder %s108, %s110
    %p114 = scmp.eq.s32.totalorder %s11, 0
    %p115 = por %p113, %p114
    %p116 = scmp.ne.s32.totalorder %s108, %s110
    %p117 = scmp.eq.s32.totalorder %s16, 1
    %p118 = por %p116, %p117
    %p119 = scmp.ne.s32.totalorder %s110, %s111
    %p120 = scmp.eq.s32.totalorder %s16, 0
    %p121 = por %p119, %p120
    %p122 = scmp.ne.s32.totalorder %s110, %s111
    %p123 = scmp.eq.s32.totalorder %s17, 1
    %p124 = por %p122, %p123
    %p126 = scmp.ne.s32.totalorder %s111, %s125
    %p127 = scmp.eq.s32.totalorder %s17, 0
    %p128 = por %p126, %p127
    %s129 = ssub.s32 %s11, %s18
    %p130 = scmp.eq.s32.totalorder %s129, 0
    %s132 = sadd.s32 %s131, 1
    %s133 = scalar_select %p130, %s131, %s132
    %p136 = pneg %p130
    %p137 = scmp.eq.s32.totalorder %s11, 1
    %p138 = por %p136, %p137
    %p139 = scmp.ne.s32.totalorder %s131, %s134
    %p140 = scmp.eq.s32.totalorder %s11, 0
    %p141 = por %p139, %p140
    %p142 = scmp.ne.s32.totalorder %s131, %s134
    %p143 = scmp.eq.s32.totalorder %s16, 1
    %p144 = por %p142, %p143
    %p145 = scmp.ne.s32.totalorder %s134, %s135
    %p146 = scmp.eq.s32.totalorder %s16, 0
    %p147 = por %p145, %p146
    %p148 = scmp.ne.s32.totalorder %s134, %s135
    %p149 = scmp.eq.s32.totalorder %s17, 1
    %p150 = por %p148, %p149
    %p152 = scmp.ne.s32.totalorder %s135, %s151
    %p153 = scmp.eq.s32.totalorder %s17, 0
    %p154 = por %p152, %p153
    %p155 = scmp.le.s32.totalorder 1, %s11
    %p156 = scmp.lt.s32.totalorder %s11, 3
    %p157 = pnand %p155, %p156
    %p158 = pneg %p157
    // Predicated region
    $region9: #{qnetwork_forward.1} parent=5 // pred_check
      _
    $region10: #{qnetwork_forward.1} parent=5 // pred_check_branch
      %160 = sbr.rel (%p157) target = $region12
    $region11: #{qnetwork_forward.1} parent=5 // pred_region
      %s161 = ssub.s32 %s11, 1
      // Predicated region
      $region13: #{qnetwork_forward.1} parent=11 // pred_check
        %p162 = pneg %p58
      $region14: #{qnetwork_forward.1} parent=11 // pred_check_branch
        %164 = sbr.rel (%p162) target = $region16
      $region15: #{qnetwork_forward.1} parent=11 // pred_region
        _
      $region16: #{qnetwork_forward.1} parent=11 // pred_fallthru
        _
      // Predicated region
      $region17: #{qnetwork_forward.1} parent=11 // pred_check
        %p165 = pneg %p79
      $region18: #{qnetwork_forward.1} parent=11 // pred_check_branch
        %167 = sbr.rel (%p165) target = $region20
      $region19: #{qnetwork_forward.1} parent=11 // pred_region
        _
      $region20: #{qnetwork_forward.1} parent=11 // pred_fallthru
        _
      // Predicated region
      $region21: #{qnetwork_forward.1} parent=11 // pred_check
        %p168 = pneg %p100
      $region22: #{qnetwork_forward.1} parent=11 // pred_check_branch
        %170 = sbr.rel (%p168) target = $region24
      $region23: #{qnetwork_forward.1} parent=11 // pred_region
        _
      $region24: #{qnetwork_forward.1} parent=11 // pred_fallthru
        _
      // Predicated region
      $region25: #{qnetwork_forward.1} parent=11 // pred_check
        %p171 = pneg %p121
      $region26: #{qnetwork_forward.1} parent=11 // pred_check_branch
        %173 = sbr.rel (%p171) target = $region28
      $region27: #{qnetwork_forward.1} parent=11 // pred_region
        _
      $region28: #{qnetwork_forward.1} parent=11 // pred_fallthru
        _
    $region12: #{qnetwork_forward.1} parent=5 // pred_fallthru
      _
    %p174 = scmp.lt.s32.totalorder %s11, 2
    // Predicated region
    $region29: #{qnetwork_forward.1} parent=5 // pred_check
      %p175 = pneg %p174
    $region30: #{qnetwork_forward.1} parent=5 // pred_check_branch
      %177 = sbr.rel (%p175) target = $region32
    $region31: #{qnetwork_forward.1} parent=5 // pred_region
      // Predicated region
      $region33: #{qnetwork_forward.1} parent=31 // pred_check
        %p178 = pneg %p31
      $region34: #{qnetwork_forward.1} parent=31 // pred_check_branch
        %180 = sbr.rel (%p178) target = $region36
      $region35: #{qnetwork_forward.1} parent=31 // pred_region
        %s181 = smul.u32 16, %s11
        %p182 = scmp.lt.s32.totalorder %s181, 31
        %s183 = scalar_select %p182, %s181, 31
        %s184 = smul.addr %s183, 4
        %s185 = scalar_lea.vmem %s0, %s184
        %s186 = smul.u32 16, %s11
      $region36: #{qnetwork_forward.1} parent=31 // pred_fallthru
        _
    $region32: #{qnetwork_forward.1} parent=5 // pred_fallthru
      _
    %p187 = scmp.le.s32.totalorder 1, %s11
    %p188 = scmp.lt.s32.totalorder %s11, 3
    %p189 = pnand %p187, %p188
    %p190 = pneg %p189
    // Predicated region
    $region37: #{qnetwork_forward.1} parent=5 // pred_check
      _
    $region38: #{qnetwork_forward.1} parent=5 // pred_check_branch
      %192 = sbr.rel (%p189) target = $region40
    $region39: #{qnetwork_forward.1} parent=5 // pred_region
      %s193 = ssub.s32 %s11, 1
      %s194 = smul.u32 16, %s16
      %p195 = scmp.lt.s32.totalorder %s194, 31
      %s196 = scalar_select %p195, %s194, 31
      %s197 = smul.addr %s196, 4
      %s198 = scalar_lea.vmem %s0, %s197
      %p199 = pneg %p37
      %p200 = pneg %p34
      %p201 = pneg %p58
      %p202 = pneg %p55
      %p203 = pneg %p79
      %p204 = pneg %p76
      %p205 = pneg %p100
      %p206 = pneg %p97
      %p207 = pneg %p121
      %p208 = pneg %p118
      %p209 = pneg %p147
      %p210 = pneg %p144
      %p211 = scmp.lt.s32.totalorder %s16, 1
      %s212 = scalar_select %p211, %s16, 1
      %s213 = smul.addr %s212, 8
      %s214 = scalar_lea.vmem %s5, %s213
      %s215 = smul.u32 16, %s16
      %p216 = scmp.lt.s32.totalorder %s215, 31
      %s217 = scalar_select %p216, %s215, 31
      %s218 = smul.addr %s217, 4
      %s219 = scalar_lea.vmem %s0, %s218
      %s220 = smul.u32 16, %s16
      %p221 = scmp.lt.s32.totalorder %s16, 1
      %s222 = scalar_select %p221, %s16, 1
      %s223 = smul.addr %s222, 8
      %s224 = scalar_lea.vmem %s5, %s223
      %v226 = vld [vmem:[%s4] sm:$0xff]
      %v227 = vld [vmem:[%s4 + $0x8] sm:$0xff]
      %v228 = vld [vmem:[%s4 + $0x10] sm:$0xff]
      %v229 = vld [vmem:[%s4 + $0x18] sm:$0xff]
      %v230 = vld [vmem:[%s4 + $0x20] sm:$0xff]
      %v231 = vld [vmem:[%s4 + $0x28] sm:$0xff]
      %v232 = vld [vmem:[%s4 + $0x30] sm:$0xff]
      %v233 = vld [vmem:[%s4 + $0x38] sm:$0xff]
      %v234 = vld [vmem:[%s219] sm:$0xf]
      %v235 = vld [vmem:[%s219 + $0x4] sm:$0xf]
      %v236 = vld [vmem:[%s219 + $0x8] sm:$0xf]
      %v237 = vld [vmem:[%s219 + $0xc] sm:$0xf]
      %v238 = vld [vmem:[%s219 + $0x10] sm:$0xf]
      %v239 = vld [vmem:[%s219 + $0x14] sm:$0xf]
      %v240 = vld [vmem:[%s219 + $0x18] sm:$0xf]
      %v241 = vld [vmem:[%s219 + $0x1c] sm:$0xf]
      %v242 = vld [vmem:[%s219 + $0x20] sm:$0xf]
      %v243 = vld [vmem:[%s219 + $0x24] sm:$0xf]
      %v244 = vld [vmem:[%s219 + $0x28] sm:$0xf]
      %v245 = vld [vmem:[%s219 + $0x2c] sm:$0xf]
      %v246 = vld [vmem:[%s219 + $0x30] sm:$0xf]
      %v247 = vld [vmem:[%s219 + $0x34] sm:$0xf]
      %v248 = vld [vmem:[%s219 + $0x38] sm:$0xf]
      %v249 = vld [vmem:[%s219 + $0x3c] sm:$0xf]
      %v250 = vld [vmem:[%s1] sm:$0xf]
      %v251 = vld [vmem:[%s1 + $0x4] sm:$0xf]
      %v252 = vld [vmem:[%s1 + $0x8] sm:$0xf]
      %v253 = vld [vmem:[%s1 + $0xc] sm:$0xf]
      %v254 = vld [vmem:[%s1 + $0x10] sm:$0xf]
      %v255 = vld [vmem:[%s1 + $0x14] sm:$0xf]
      %v256 = vld [vmem:[%s1 + $0x18] sm:$0xf]
      %v257 = vld [vmem:[%s1 + $0x1c] sm:$0xf]
      %259 = vset.pattern.permute.xlu0 0
      %260 = vperm.xlu0 %259, %v226
      %v261 = vpop.permute.xlu0 %260
      %264 = vset.pattern.permute.xlu0 0
      %265 = vperm.xlu0 %264, %v227
      %v266 = vpop.permute.xlu0 %265
      %269 = vset.pattern.permute.xlu0 0
      %270 = vperm.xlu0 %269, %v228
      %v271 = vpop.permute.xlu0 %270
      %274 = vset.pattern.permute.xlu0 0
      %275 = vperm.xlu0 %274, %v229
      %v276 = vpop.permute.xlu0 %275
      %279 = vset.pattern.permute.xlu0 0
      %280 = vperm.xlu0 %279, %v230
      %v281 = vpop.permute.xlu0 %280
      %284 = vset.pattern.permute.xlu0 0
      %285 = vperm.xlu0 %284, %v231
      %v286 = vpop.permute.xlu0 %285
      %289 = vset.pattern.permute.xlu0 0
      %290 = vperm.xlu0 %289, %v232
      %v291 = vpop.permute.xlu0 %290
      %294 = vset.pattern.permute.xlu0 0
      %295 = vperm.xlu0 %294, %v233
      %v296 = vpop.permute.xlu0 %295
      %v306 = vunpack.c.l.b16 %v250
      %v307 = vunpack.c.l.b16 %v251
      %v308 = vunpack.c.l.b16 %v252
      %v309 = vunpack.c.l.b16 %v253
      %v310 = vunpack.c.l.b16 %v254
      %v311 = vunpack.c.l.b16 %v255
      %v312 = vunpack.c.l.b16 %v256
      %v313 = vunpack.c.l.b16 %v257
      %v314 = vpack.c.b16 %v307, %v306
      %v315 = vpack.c.b16 %v309, %v308
      %v316 = vpack.c.b16 %v311, %v310
      %v317 = vpack.c.b16 %v313, %v312
      %v334 = vunpack.c.l.b16 %v234
      %v335 = vunpack.c.l.b16 %v235
      %v336 = vunpack.c.l.b16 %v236
      %v337 = vunpack.c.l.b16 %v237
      %v338 = vunpack.c.l.b16 %v238
      %v339 = vunpack.c.l.b16 %v239
      %v340 = vunpack.c.l.b16 %v240
      %v341 = vunpack.c.l.b16 %v241
      %v342 = vunpack.c.l.b16 %v242
      %v343 = vunpack.c.l.b16 %v243
      %v344 = vunpack.c.l.b16 %v244
      %v345 = vunpack.c.l.b16 %v245
      %v346 = vunpack.c.l.b16 %v246
      %v347 = vunpack.c.l.b16 %v247
      %v348 = vunpack.c.l.b16 %v248
      %v349 = vunpack.c.l.b16 %v249
      %v350 = vpack.c.b16 %v335, %v334
      %v351 = vpack.c.b16 %v337, %v336
      %v352 = vpack.c.b16 %v339, %v338
      %v353 = vpack.c.b16 %v341, %v340
      %v354 = vpack.c.b16 %v343, %v342
      %v355 = vpack.c.b16 %v345, %v344
      %v356 = vpack.c.b16 %v347, %v346
      %v357 = vpack.c.b16 %v349, %v348
      %vm358 = vcmask 64512
      %v360 = vsel %vm358, %v314, 0
      %v363 = vsel %vm358, %v315, 0
      %v366 = vsel %vm358, %v316, 0
      %v369 = vsel %vm358, %v317, 0
      %v372 = vsel %vm358, %v350, 0
      %v375 = vsel %vm358, %v351, 0
      %v378 = vsel %vm358, %v352, 0
      %v381 = vsel %vm358, %v353, 0
      %v384 = vsel %vm358, %v354, 0
      %v387 = vsel %vm358, %v355, 0
      %v390 = vsel %vm358, %v356, 0
      %v393 = vsel %vm358, %v357, 0
      %395 = vmatpush.bf16.xpose.msra.mxu0 %v393
      %396 = vmatpush.bf16.xpose.msra.mxu0 %v390
      %397 = vmatpush.bf16.xpose.msra.mxu0 %v387
      %398 = vmatpush.bf16.xpose.msra.mxu0 %v384
      %399 = vmatpush.bf16.xpose.msra.mxu0 %v381
      %400 = vmatpush.bf16.xpose.msra.mxu0 %v378
      %401 = vmatpush.bf16.xpose.msra.mxu0 %v375
      %402 = vmatpush.bf16.xpose.msra.mxu0 %v372
      %403 = vmatmul.bf16.gmra.mxu0 %v360
      %v404 = vpop.f32.mrf.mxu0
      %v405 = vadd.f32 %v261, %v404
      %v406 = vpop.f32.mrf.mxu0
      %v407 = vadd.f32 %v266, %v406
      %408 = vmatmul.bf16.gmra.mxu0 %v363
      %v409 = vpop.f32.mrf.mxu0
      %v410 = vadd.f32 %v271, %v409
      %v411 = vpop.f32.mrf.mxu0
      %v412 = vadd.f32 %v276, %v411
      %413 = vmatmul.bf16.gmra.mxu0 %v366
      %v414 = vpop.f32.mrf.mxu0
      %v415 = vadd.f32 %v281, %v414
      %v416 = vpop.f32.mrf.mxu0
      %v417 = vadd.f32 %v286, %v416
      %418 = vmatmul.bf16.gmra.mxu0 %v369
      %v419 = vpop.f32.mrf.mxu0
      %v420 = vadd.f32 %v291, %v419
      %v421 = vpop.f32.mrf.mxu0
      %v422 = vadd.f32 %v296, %v421
      %423 = vdwg.mxu0
      %v424 = vmax.f32 %v405, 0.0
      %v425 = vmax.f32 %v407, 0.0
      %v426 = vmax.f32 %v410, 0.0
      %v427 = vmax.f32 %v412, 0.0
      %v428 = vmax.f32 %v415, 0.0
      %v429 = vmax.f32 %v417, 0.0
      %v430 = vmax.f32 %v420, 0.0
      %v431 = vmax.f32 %v422, 0.0
      %v432 = vpack.c.bf16 %v425, %v424
      %v433 = vpack.c.bf16 %v427, %v426
      %v434 = vpack.c.bf16 %v429, %v428
      %v435 = vpack.c.bf16 %v431, %v430
      %v436 = vld [vmem:[%s2] sm:$0xf]
      %v437 = vld [vmem:[%s2 + $0x4] sm:$0xf]
      %v438 = vld [vmem:[%s2 + $0x8] sm:$0xf]
      %v439 = vld [vmem:[%s2 + $0xc] sm:$0xf]
      %v440 = vld [vmem:[%s2 + $0x10] sm:$0xf]
      %v441 = vld [vmem:[%s2 + $0x14] sm:$0xf]
      %v442 = vld [vmem:[%s2 + $0x18] sm:$0xf]
      %v443 = vld [vmem:[%s2 + $0x1c] sm:$0xf]
      %444 = vset.pattern.permute.xlu0 1
      %445 = vperm.xlu0 %444, %v226
      %v446 = vpop.permute.xlu0 %445
      %448 = vset.pattern.permute.xlu0 1
      %449 = vperm.xlu0 %448, %v227
      %v450 = vpop.permute.xlu0 %449
      %452 = vset.pattern.permute.xlu0 1
      %453 = vperm.xlu0 %452, %v228
      %v454 = vpop.permute.xlu0 %453
      %456 = vset.pattern.permute.xlu0 1
      %457 = vperm.xlu0 %456, %v229
      %v458 = vpop.permute.xlu0 %457
      %460 = vset.pattern.permute.xlu0 1
      %461 = vperm.xlu0 %460, %v230
      %v462 = vpop.permute.xlu0 %461
      %464 = vset.pattern.permute.xlu0 1
      %465 = vperm.xlu0 %464, %v231
      %v466 = vpop.permute.xlu0 %465
      %468 = vset.pattern.permute.xlu0 1
      %469 = vperm.xlu0 %468, %v232
      %v470 = vpop.permute.xlu0 %469
      %472 = vset.pattern.permute.xlu0 1
      %473 = vperm.xlu0 %472, %v233
      %v474 = vpop.permute.xlu0 %473
      %v484 = vunpack.c.l.b16 %v436
      %v485 = vunpack.c.l.b16 %v437
      %v486 = vunpack.c.l.b16 %v438
      %v487 = vunpack.c.l.b16 %v439
      %v488 = vunpack.c.l.b16 %v440
      %v489 = vunpack.c.l.b16 %v441
      %v490 = vunpack.c.l.b16 %v442
      %v491 = vunpack.c.l.b16 %v443
      %v492 = vpack.c.b16 %v485, %v484
      %v493 = vpack.c.b16 %v487, %v486
      %v494 = vpack.c.b16 %v489, %v488
      %v495 = vpack.c.b16 %v491, %v490
      %vm496 = vcmask 523264
      %v498 = vsel %vm496, %v492, 0
      %v501 = vsel %vm496, %v493, 0
      %v504 = vsel %vm496, %v494, 0
      %v507 = vsel %vm496, %v495, 0
      %509 = vmatpush.bf16.msra.mxu0 0
      %510 = vmatpush.bf16.msra.mxu0 0
      %511 = vmatpush.bf16.msra.mxu0 0
      %512 = vmatpush.bf16.msra.mxu0 0
      %513 = vmatpush.bf16.msra.mxu0 %v435
      %514 = vmatpush.bf16.msra.mxu0 %v434
      %515 = vmatpush.bf16.msra.mxu0 %v433
      %516 = vmatpush.bf16.msra.mxu0 %v432
      %517 = vmatmul.bf16.gmra.mxu0 %v498
      %v518 = vpop.f32.mrf.mxu0
      %v519 = vadd.f32 %v446, %v518
      %v520 = vpop.f32.mrf.mxu0
      %v521 = vadd.f32 %v450, %v520
      %522 = vmatmul.bf16.gmra.mxu0 %v501
      %v523 = vpop.f32.mrf.mxu0
      %v524 = vadd.f32 %v454, %v523
      %v525 = vpop.f32.mrf.mxu0
      %v526 = vadd.f32 %v458, %v525
      %527 = vmatmul.bf16.gmra.mxu0 %v504
      %v528 = vpop.f32.mrf.mxu0
      %v529 = vadd.f32 %v462, %v528
      %v530 = vpop.f32.mrf.mxu0
      %v531 = vadd.f32 %v466, %v530
      %532 = vmatmul.bf16.gmra.mxu0 %v507
      %v533 = vpop.f32.mrf.mxu0
      %v534 = vadd.f32 %v470, %v533
      %v535 = vpop.f32.mrf.mxu0
      %v536 = vadd.f32 %v474, %v535
      %537 = vdwg.mxu0
      %v538 = vmax.f32 %v519, 0.0
      %v539 = vmax.f32 %v521, 0.0
      %v540 = vmax.f32 %v524, 0.0
      %v541 = vmax.f32 %v526, 0.0
      %v542 = vmax.f32 %v529, 0.0
      %v543 = vmax.f32 %v531, 0.0
      %v544 = vmax.f32 %v534, 0.0
      %v545 = vmax.f32 %v536, 0.0
      %v546 = vpack.c.bf16 %v539, %v538
      %v547 = vpack.c.bf16 %v541, %v540
      %v548 = vpack.c.bf16 %v543, %v542
      %v549 = vpack.c.bf16 %v545, %v544
      %v550 = vld [vmem:[%s3] sm:$0xf]
      %551 = vset.pattern.permute.xlu0 2
      %552 = vperm.xlu0 %551, %v226
      %v553 = vpop.permute.xlu0 %552
      %v556 = vsel %vm496, %v550, 0
      %558 = vmatpush.bf16.msra.mxu0 0
      %559 = vmatpush.bf16.msra.mxu0 0
      %560 = vmatpush.bf16.msra.mxu0 0
      %561 = vmatpush.bf16.msra.mxu0 0
      %562 = vmatpush.bf16.msra.mxu0 %v549
      %563 = vmatpush.bf16.msra.mxu0 %v548
      %564 = vmatpush.bf16.msra.mxu0 %v547
      %565 = vmatpush.bf16.msra.mxu0 %v546
      %566 = vmatmul.bf16.gmra.mxu0 %v556
      %v567 = vpop.f32.mrf.mxu0
      %v568 = vadd.f32 %v553, %v567
      %v569 = vpop.f32.mrf.mxu0
      %570 = vdwg.mxu0
      %571 = vst [vmem:[%s224] sm:$0xff] %v568
      %p572 = scmp.lt.s32.totalorder %s16, 1
      %s573 = scalar_select %p572, %s16, 1
      %s574 = smul.addr %s573, 8
      %s575 = scalar_lea.vmem %s5, %s574
      // Predicated region
      $region41: #{qnetwork_forward.1} parent=39 // pred_check
        %p576 = pneg %p144
      $region42: #{qnetwork_forward.1} parent=39 // pred_check_branch
        %578 = sbr.rel (%p576) target = $region44
      $region43: #{qnetwork_forward.1} parent=39 // pred_region
        _
      $region44: #{qnetwork_forward.1} parent=39 // pred_fallthru
        _
    $region40: #{qnetwork_forward.1} parent=5 // pred_fallthru
      _
    %p579 = scmp.le.s32.totalorder 2, %s11
    // Predicated region
    $region45: #{qnetwork_forward.1} parent=5 // pred_check
      %p580 = pneg %p579
    $region46: #{qnetwork_forward.1} parent=5 // pred_check_branch
      %582 = sbr.rel (%p580) target = $region48
    $region47: #{qnetwork_forward.1} parent=5 // pred_region
      %s583 = ssub.s32 %s11, 2
      // Predicated region
      $region49: #{qnetwork_forward.1} parent=47 // pred_check
        %p584 = pneg %p150
      $region50: #{qnetwork_forward.1} parent=47 // pred_check_branch
        %586 = sbr.rel (%p584) target = $region52
      $region51: #{qnetwork_forward.1} parent=47 // pred_region
        %p587 = scmp.lt.s32.totalorder %s17, 1
        %s588 = scalar_select %p587, %s17, 1
        %s589 = smul.addr %s588, 8
        %s590 = scalar_lea.vmem %s5, %s589
      $region52: #{qnetwork_forward.1} parent=47 // pred_fallthru
        _
    $region48: #{qnetwork_forward.1} parent=5 // pred_fallthru
      _
  $region6: #{qnetwork_forward.1} parent=0 // loop_footer
    %s15 = sadd.s32 1, %s11
  $region7: #{qnetwork_forward.1} parent=0 // loop_footer_branch
    %10 = sbr.rel target = $region3
  $region8: #{qnetwork_forward.1} parent=0 // loop_exit
    _

</llo_original>
